<compile_context>
chip_gen: v6e
topology: v6e:2x2x1
jax: 0.10.0
libtpu: 0.0.40
codegen_flags: <defaults>
</compile_context>

<pallas_src>
import jax
import jax.numpy as jnp
from jax.experimental import pallas as pl
from jax.experimental.pallas import tpu as pltpu


def _round_up(x, m):
    return (x + m - 1) // m * m


def _convnorm_body(x_ref, w_ref, b_ref, o_ref, im_ref):
    """One (batch, T-tile) grid step.

    x_ref  : (1, C_in_p, T_pad)  bf16, zero-padded (channels + time halo) in wrapper;
                                 block index is independent of j -> resident per batch.
    w_ref  : (C_out, k*C_in_p)   bf16 fused per-tap weights, tap-major columns.
    b_ref  : (C_out, 1) f32, or None (bias-free kernel variant).
    o_ref  : (1, C_out, tile_t)  output tile, input dtype.
    im_ref : VMEM (k*C_in_p, T_im) bf16 im2col scratch, filled once per batch at j==0.
    """
    j = pl.program_id(1)
    C_in_p = x_ref.shape[1]
    kc, T_im = im_ref.shape
    k = kc // C_in_p
    tile_t = o_ref.shape[2]

    # Build the full im2col once per batch element: k aligned row-block stores.
    # The (lane-shifted) reads of x happen once per batch, NOT once per tile.
    @pl.when(j == 0)
    def _():
        for t in range(k):                                   # static python loop
            im_ref[t * C_in_p:(t + 1) * C_in_p, :] = x_ref[0, :, t:t + T_im]

    # Per tile: ONE contiguous, lane-aligned RHS load + ONE deep MXU matmul.
    base = pl.multiple_of(j * tile_t, tile_t)
    rhs = im_ref[:, pl.ds(base, tile_t)]                     # (k*C_in_p, tile_t)
    acc = jnp.dot(w_ref[...], rhs, preferred_element_type=jnp.float32)
    if b_ref is not None:
        acc = acc + b_ref[...]                               # (C_out,1) lane-broadcast
    o_ref[0] = acc.astype(o_ref.dtype)


def _kernel_with_bias(x_ref, w_ref, b_ref, o_ref, im_ref):
    _convnorm_body(x_ref, w_ref, b_ref, o_ref, im_ref)


def _kernel_no_bias(x_ref, w_ref, o_ref, im_ref):
    _convnorm_body(x_ref, w_ref, None, o_ref, im_ref)


def conv_norm(signal, weight, bias=None, *, stride=1, dilation=1, padding=None,
              tile_t=None):
    """ConvNorm forward.  signal: (B, C_in, T); weight: (C_out, C_in, k) torch
    Conv1d layout; bias: (C_out,) or None.  Returns (B, C_out, T)."""
    B, C_in, T = signal.shape
    C_out, C_in_w, k = weight.shape
    assert C_in_w == C_in, "weight / signal channel mismatch"

    # TODO(synk): stride > 1, dilation > 1 and explicit non-'same' / even-kernel
    # padding are not implemented in the Pallas path (ConvNorm's default config
    # -- odd k, 'same' padding, stride 1, dilation 1 -- is fully covered).
    if stride != 1 or dilation != 1:
        raise NotImplementedError("stride/dilation != 1 not supported")
    if padding is None:
        assert k % 2 == 1, "ConvNorm requires odd kernel_size when padding is None"
        padding = (k - 1) // 2
    if k % 2 != 1 or padding != (k - 1) // 2:
        raise NotImplementedError("only odd-k 'same' padding supported")
    p = padding

    out_dtype = signal.dtype
    out_bytes = jnp.dtype(out_dtype).itemsize

    # ---- wrapper-side layout prep (one fused XLA cast+pad, no in-kernel padding) ----
    C_in_p = max(_round_up(C_in, 16), 16)      # bf16 sublane packing -> dense taps
    T_im = _round_up(T, 128)                   # im2col width, lane aligned
    T_pad = T_im + k - 1                       # padded-signal width (covers all taps)

    x = signal.astype(jnp.bfloat16)
    x = jnp.pad(x, ((0, 0), (0, C_in_p - C_in), (p, T_pad - T - p)))

    # torch (C_out, C_in, k) -> (C_out, k*C_in_p) with tap-major columns, matching
    # the im2col row ordering; bf16 operands for the MXU.
    w2d = jnp.transpose(weight, (0, 2, 1))                       # (C_out, k, C_in)
    w2d = jnp.pad(w2d, ((0, 0), (0, 0), (0, C_in_p - C_in)))     # zero padded chans
    w2d = w2d.reshape(C_out, k * C_in_p).astype(jnp.bfloat16)

    # ---- generation-aware VMEM budget & T-tile selection ----
    vmem_cap = 64 << 20                        # conservative default (v7x physical)
    try:
        info = pltpu.get_tpu_info()
        vmem_cap = int(getattr(info, "vmem_capacity_bytes", vmem_cap))
    except Exception:
        pass
    budget = int(vmem_cap * 0.7)

    def vmem_need(tt):
        need = 2 * C_in_p * T_pad * 2                 # resident x block (dbl-buffered)
        need += k * C_in_p * T_im * 2                 # im2col scratch
        need += 2 * C_out * (k * C_in_p) * 2          # weights
        need += 2 * C_out * tt * out_bytes            # output tile (dbl-buffered)
        if bias is not None:
            need += 2 * C_out * 4
        return need

    if tile_t is None:
        cands = [c for c in (2048, 1024, 512, 256, 128) if T % c == 0]
        tile_t = next((c for c in cands if vmem_need(c) <= budget), None)
        if tile_t is None:
            tile_t = cands[-1] if cands else T        # fall back (masked stores if
    assert T % tile_t == 0, "tile_t must divide T"    #  T is not a 128-multiple)
    # TODO(synk): if the per-batch resident row (2*C_in_p*T_pad bf16 bytes) itself
    # exceeds the VMEM budget (very long T on v7x), switch to a per-tile halo-window
    # manual DMA (memory_space=pl.ANY) instead of the full-row-resident scheme.

    vmem_limit = int(min(max(2 * vmem_need(tile_t), 16 << 20), int(vmem_cap * 0.75)))

    # ---- pallas_call ----
    in_specs = [
        # x: block index independent of j -> stays VMEM-resident across the T tiles.
        pl.BlockSpec((1, C_in_p, T_pad), lambda b, j: (b, 0, 0)),
        pl.BlockSpec((C_out, k * C_in_p), lambda b, j: (0, 0)),
    ]
    inputs = [x, w2d]
    if bias is not None:
        in_specs.append(pl.BlockSpec((C_out, 1), lambda b, j: (0, 0)))
        inputs.append(bias.reshape(C_out, 1).astype(jnp.float32))
        kernel = _kernel_with_bias
    else:
        kernel = _kernel_no_bias

    grid = (B, T // tile_t)
    return pl.pallas_call(
        kernel,
        out_shape=jax.ShapeDtypeStruct((B, C_out, T), out_dtype),
        grid_spec=pltpu.PrefetchScalarGridSpec(
            num_scalar_prefetch=0,
            grid=grid,
            in_specs=in_specs,
            out_specs=pl.BlockSpec((1, C_out, tile_t), lambda b, j: (b, 0, j)),
            scratch_shapes=[pltpu.VMEM((k * C_in_p, T_im), jnp.bfloat16)],
        ),
        compiler_params=pltpu.CompilerParams(
            # T axis MUST stay "arbitrary": the im2col scratch is filled at j == 0
            # and reused for j > 0 of the same batch element (in-order per core).
            # TODO(synk): on v7x (2 TCs) with tiny B, a per-tile halo DMA (or a
            # wrapper-side im2col) would let this axis be "parallel" as well.
            dimension_semantics=("parallel", "arbitrary"),
            vmem_limit_bytes=vmem_limit,
        ),
    )(*inputs)


def _reference(signal, weight, bias):
    """Pure-JAX reference of torch Conv1d 'same' (odd k, stride 1), with the same
    bf16 operand rounding / f32 accumulation as the kernel."""
    C_out, C_in, k = weight.shape
    p = (k - 1) // 2
    T = signal.shape[2]
    x32 = signal.astype(jnp.bfloat16).astype(jnp.float32)
    w32 = weight.astype(jnp.bfloat16).astype(jnp.float32)
    xp = jnp.pad(x32, ((0, 0), (0, 0), (p, p)))
    out = jnp.zeros((signal.shape[0], C_out, T), jnp.float32)
    for t in range(k):
        out = out + jnp.einsum("oc,bcl->bol", w32[:, :, t], xp[:, :, t:t + T],
                               precision=jax.lax.Precision.HIGHEST)
    if bias is not None:
        out = out + bias[None, :, None]
    return out.astype(signal.dtype)


if __name__ == "__main__":
    key = jax.random.PRNGKey(0)
    kx, kw, kb, kx2, kw2, kx3, kw3, kb3 = jax.random.split(key, 8)

    # Case 1: k = 5 'same' conv with bias, multiple T tiles per batch element.
    B, C_in, C_out, T, K = 2, 16, 32, 256, 5
    x = jax.random.normal(kx, (B, C_in, T), jnp.float32)
    w = 0.05 * jax.random.normal(kw, (C_out, C_in, K), jnp.float32)
    b = 0.05 * jax.random.normal(kb, (C_out,), jnp.float32)
    out = jax.block_until_ready(conv_norm(x, w, b, tile_t=128))
    ref = _reference(x, w, b)
    if out.shape != ref.shape or not jnp.allclose(out, ref, atol=1e-3, rtol=1e-3):
        err = float(jnp.max(jnp.abs(out - ref)))
        raise AssertionError(f"Pallas ConvNorm mismatch (k=5), max abs err {err}")

    # Case 2: k = 1 pointwise conv, no bias, C_in not a multiple of 16 (channel pad).
    B2, C_in2, C_out2, T2, K2 = 2, 8, 16, 128, 1
    x2 = jax.random.normal(kx2, (B2, C_in2, T2), jnp.float32)
    w2 = 0.05 * jax.random.normal(kw2, (C_out2, C_in2, K2), jnp.float32)
    out2 = jax.block_until_ready(conv_norm(x2, w2, None))
    ref2 = _reference(x2, w2, None)
    if not jnp.allclose(out2, ref2, atol=1e-3, rtol=1e-3):
        err2 = float(jnp.max(jnp.abs(out2 - ref2)))
        raise AssertionError(f"Pallas ConvNorm mismatch (k=1), max abs err {err2}")

    # Case 3: k = 3, T not a multiple of 128 (ragged fallback tile_t = T path).
    B3, C_in3, C_out3, T3, K3 = 1, 16, 8, 192, 3
    x3 = jax.random.normal(kx3, (B3, C_in3, T3), jnp.float32)
    w3 = 0.05 * jax.random.normal(kw3, (C_out3, C_in3, K3), jnp.float32)
    b3 = 0.05 * jax.random.normal(kb3, (C_out3,), jnp.float32)
    out3 = jax.block_until_ready(conv_norm(x3, w3, b3))
    ref3 = _reference(x3, w3, b3)
    if not jnp.allclose(out3, ref3, atol=1e-3, rtol=1e-3):
        err3 = float(jnp.max(jnp.abs(out3 - ref3)))
        raise AssertionError(f"Pallas ConvNorm mismatch (k=3 ragged), max abs err {err3}")

    print("KERNEL_OK")
</pallas_src>

<mosaic_0001>
module attributes {stable_mosaic.version = 11 : i64} {
  func.func @_kernel_with_bias(%arg0: i32, %arg1: i32, %arg2: memref<1x16x260xbf16, #tpu.memory_space<vmem>>, %arg3: memref<32x80xbf16, #tpu.memory_space<vmem>>, %arg4: memref<32x1xf32, #tpu.memory_space<vmem>>, %arg5: memref<1x32x128xf32, #tpu.memory_space<vmem>>, %arg6: memref<80x256xbf16, #tpu.memory_space<vmem>>) attributes {dimension_semantics = [#tpu.dimension_semantics<parallel>, #tpu.dimension_semantics<arbitrary>], iteration_bounds = array<i64: 2, 2>, scalar_prefetch = 0 : i64, scratch_operands = 1 : i64, tpu.core_type = #tpu.core_type<tc>, window_params = [{transform_indices = @transform_0, window_bounds = array<i64: 1, 16, 260>}, {pipeline_mode = #tpu.pipeline_mode<synchronous>, transform_indices = @transform_1, window_bounds = array<i64: 32, 80>}, {pipeline_mode = #tpu.pipeline_mode<synchronous>, transform_indices = @transform_2, window_bounds = array<i64: 32, 1>}, {transform_indices = @transform_3, window_bounds = array<i64: 1, 32, 128>}]} {
    %c0_i32 = arith.constant 0 : i32
    %0 = arith.cmpi eq, %arg1, %c0_i32 : i32
    %1 = arith.extui %0 : i1 to i32
    %c0_i32_0 = arith.constant 0 : i32
    %2 = arith.cmpi ne, %1, %c0_i32_0 : i32
    scf.if %2 {
      %c0_8 = arith.constant 0 : index
      %c0_9 = arith.constant 0 : index
      %c0_10 = arith.constant 0 : index
      %15 = vector.load %arg2[%c0_8, %c0_9, %c0_10] : memref<1x16x260xbf16, #tpu.memory_space<vmem>>, vector<1x16x256xbf16>
      %16 = vector.shape_cast %15 : vector<1x16x256xbf16> to vector<16x256xbf16>
      %c0_11 = arith.constant 0 : index
      %c0_12 = arith.constant 0 : index
      %17 = vector.load %arg6[%c0_11, %c0_12] : memref<80x256xbf16, #tpu.memory_space<vmem>>, vector<16x256xbf16>
      tpu.vector_store %arg6[%c0_11, %c0_12], %16 {strides = array<i32>} : memref<80x256xbf16, #tpu.memory_space<vmem>>, vector<16x256xbf16>,
      %c0_13 = arith.constant 0 : index
      %c0_14 = arith.constant 0 : index
      %c1 = arith.constant 1 : index
      %18 = vector.load %arg2[%c0_13, %c0_14, %c1] : memref<1x16x260xbf16, #tpu.memory_space<vmem>>, vector<1x16x256xbf16>
      %19 = vector.shape_cast %18 : vector<1x16x256xbf16> to vector<16x256xbf16>
      %c16 = arith.constant 16 : index
      %c0_15 = arith.constant 0 : index
      %20 = vector.load %arg6[%c16, %c0_15] : memref<80x256xbf16, #tpu.memory_space<vmem>>, vector<16x256xbf16>
      tpu.vector_store %arg6[%c16, %c0_15], %19 {strides = array<i32>} : memref<80x256xbf16, #tpu.memory_space<vmem>>, vector<16x256xbf16>,
      %c0_16 = arith.constant 0 : index
      %c0_17 = arith.constant 0 : index
      %c2 = arith.constant 2 : index
      %21 = vector.load %arg2[%c0_16, %c0_17, %c2] : memref<1x16x260xbf16, #tpu.memory_space<vmem>>, vector<1x16x256xbf16>
      %22 = vector.shape_cast %21 : vector<1x16x256xbf16> to vector<16x256xbf16>
      %c32 = arith.constant 32 : index
      %c0_18 = arith.constant 0 : index
      %23 = vector.load %arg6[%c32, %c0_18] : memref<80x256xbf16, #tpu.memory_space<vmem>>, vector<16x256xbf16>
      tpu.vector_store %arg6[%c32, %c0_18], %22 {strides = array<i32>} : memref<80x256xbf16, #tpu.memory_space<vmem>>, vector<16x256xbf16>,
      %c0_19 = arith.constant 0 : index
      %c0_20 = arith.constant 0 : index
      %c3 = arith.constant 3 : index
      %24 = vector.load %arg2[%c0_19, %c0_20, %c3] : memref<1x16x260xbf16, #tpu.memory_space<vmem>>, vector<1x16x256xbf16>
      %25 = vector.shape_cast %24 : vector<1x16x256xbf16> to vector<16x256xbf16>
      %c48 = arith.constant 48 : index
      %c0_21 = arith.constant 0 : index
      %26 = vector.load %arg6[%c48, %c0_21] : memref<80x256xbf16, #tpu.memory_space<vmem>>, vector<16x256xbf16>
      tpu.vector_store %arg6[%c48, %c0_21], %25 {strides = array<i32>} : memref<80x256xbf16, #tpu.memory_space<vmem>>, vector<16x256xbf16>,
      %c0_22 = arith.constant 0 : index
      %c0_23 = arith.constant 0 : index
      %c4 = arith.constant 4 : index
      %27 = vector.load %arg2[%c0_22, %c0_23, %c4] : memref<1x16x260xbf16, #tpu.memory_space<vmem>>, vector<1x16x256xbf16>
      %28 = vector.shape_cast %27 : vector<1x16x256xbf16> to vector<16x256xbf16>
      %c64 = arith.constant 64 : index
      %c0_24 = arith.constant 0 : index
      %29 = vector.load %arg6[%c64, %c0_24] : memref<80x256xbf16, #tpu.memory_space<vmem>>, vector<16x256xbf16>
      tpu.vector_store %arg6[%c64, %c0_24], %28 {strides = array<i32>} : memref<80x256xbf16, #tpu.memory_space<vmem>>, vector<16x256xbf16>,
    } else {
    }
    %c128_i32 = arith.constant 128 : i32
    %3 = arith.muli %arg1, %c128_i32 : i32
    %4 = tpu.assume_multiple %3, 128 : i32
    %c0 = arith.constant 0 : index
    %5 = arith.index_cast %4 : i32 to index
    %6 = vector.load %arg6[%c0, %5] : memref<80x256xbf16, #tpu.memory_space<vmem>>, vector<80x128xbf16>
    %c0_1 = arith.constant 0 : index
    %c0_2 = arith.constant 0 : index
    %7 = vector.load %arg3[%c0_1, %c0_2] : memref<32x80xbf16, #tpu.memory_space<vmem>>, vector<32x80xbf16>
    %cst = arith.constant dense<0.000000e+00> : vector<32x128xf32>
    %8 = tpu.matmul %7, %6, %cst {dimension_numbers = #tpu.dot_dimension_numbers<[1], [0], [0], [1], [0, 0, 1, 1], [], []>} : vector<32x80xbf16>, vector<80x128xbf16>, vector<32x128xf32> -> vector<32x128xf32>
    %c0_3 = arith.constant 0 : index
    %c0_4 = arith.constant 0 : index
    %9 = vector.load %arg4[%c0_3, %c0_4] : memref<32x1xf32, #tpu.memory_space<vmem>>, vector<32x1xf32>
    %10 = vector.broadcast %9 : vector<32x1xf32> to vector<32x128xf32>
    %11 = arith.addf %8, %10 : vector<32x128xf32>
    %c0_5 = arith.constant 0 : index
    %c0_6 = arith.constant 0 : index
    %c0_7 = arith.constant 0 : index
    %12 = vector.load %arg5[%c0_5, %c0_6, %c0_7] : memref<1x32x128xf32, #tpu.memory_space<vmem>>, vector<1x32x128xf32>
    %13 = vector.shape_cast %12 : vector<1x32x128xf32> to vector<32x128xf32>
    %14 = vector.shape_cast %11 : vector<32x128xf32> to vector<1x32x128xf32>
    tpu.vector_store %arg5[%c0_5, %c0_6, %c0_7], %14 {strides = array<i32>} : memref<1x32x128xf32, #tpu.memory_space<vmem>>, vector<1x32x128xf32>,
    return
  }
  func.func @transform_0(%arg0: i32, %arg1: i32) -> (i32, i32, i32) {
    %c0_i32 = arith.constant 0 : i32
    %c0_i32_0 = arith.constant 0 : i32
    %c0_i32_1 = arith.constant 0 : i32
    return %arg0, %c0_i32, %c0_i32_0 : i32, i32, i32
  }
  func.func @transform_1(%arg0: i32, %arg1: i32) -> (i32, i32) {
    %c0_i32 = arith.constant 0 : i32
    %c0_i32_0 = arith.constant 0 : i32
    %c0_i32_1 = arith.constant 0 : i32
    return %c0_i32, %c0_i32_0 : i32, i32
  }
  func.func @transform_2(%arg0: i32, %arg1: i32) -> (i32, i32) {
    %c0_i32 = arith.constant 0 : i32
    %c0_i32_0 = arith.constant 0 : i32
    %c0_i32_1 = arith.constant 0 : i32
    return %c0_i32, %c0_i32_0 : i32, i32
  }
  func.func @transform_3(%arg0: i32, %arg1: i32) -> (i32, i32, i32) {
    %c0_i32 = arith.constant 0 : i32
    %c0_i32_0 = arith.constant 0 : i32
    return %arg0, %c0_i32, %arg1 : i32, i32, i32
  }
}

</mosaic_0001>

<llo_original>
// kernel: tpu_custom_call.1
$region0: #{tpu_custom_call.1}
  #allocation0 [shape = 'u32[]', space=smem, size = 0x4, offset = 0x4, fixed_abs, tag = 'smem constant byte address 0x4 - core index']
  #allocation1 [shape = 'u32[144,128]{1,0:T(1,128)}', space=vmem, size = 0x12000, scoped, tag = 'internal scratch']
  #allocation2 [shape = 'bf16[80,256]{1,0:T(8,128)(2,1)}', space=vmem, size = 0xa000, scoped, tag = 'scratch operand']
  %s0 = inlined_call_operand.hbm [shape: bf16[2,16,260], index: 0, kind: input, shape index: {}]
  %s1 = inlined_call_operand.vmem [shape: bf16[32,80], index: 1, kind: input, shape index: {}]
  %s2 = inlined_call_operand.vmem [shape: f32[32,1], index: 2, kind: input, shape index: {}]
  %s3 = inlined_call_operand.hbm [shape: f32[2,32,256], index: 3, kind: output, shape index: {}]
  %s4 = sld [smem:[#allocation0]]
  $region53: #{tpu_custom_call.1} parent=0
    _
  %s6 = ssub.s32 1, %s4
  %s7 = scalar_select 0, %s6, %s4
  $region1: #{tpu_custom_call.1} parent=0
    #allocation3 [shape = 'u8[24576]{0}', space=vmem, size = 0x6000, scoped, tag = 'input window, operand 0']
    #allocation4 [shape = 's32[2]{0}', space=sflag, size = 0x8, scoped, tag = 'scoped memory for tpu_custom_call.1']
    #allocation5 [shape = 's32[2]{0}', space=sflag, size = 0x8, scoped, tag = 'scoped memory for tpu_custom_call.1']
    #allocation6 [shape = 'u8[32768]{0}', space=vmem, size = 0x8000, scoped, tag = 'output window, operand 0']
    %8 = vsyncpa [#allocation4], 0
    %s9 = scalar_lea.sflag [#allocation4], 1
    %10 = vsyncpa %s9, 0
    %11 = vsyncpa [#allocation5], 0
    %s12 = scalar_lea.sflag [#allocation5], 1
    %13 = vsyncpa %s12, 0
    loop: start=0, step=1, limit=6
    $region2: #{tpu_custom_call.1} parent=1 // loop_pre_header
      _
    $region3: #{tpu_custom_call.1} parent=1 // loop_header
      %s15 = sphi 0, %s19
      %p16 = scmp.ge.s32.totalorder %s15, 6
      %s22 = sphi 0, %s34
      %s23 = sphi 0, %s30
      %s24 = sphi 0, %s22
      %s25 = sphi 0, %s23
      %s26 = sphi 0, %s24
      %s27 = sphi 0, %s25
      %s37 = sphi 0, %s39
      %s40 = sphi 0, %s37
      %s41 = sphi 0, %s40
      %s57 = sphi 0, %s41
      %s61 = sphi 0, %s61
      %s63 = sphi 0, %s61
      %s64 = sphi 0, %s63
      %s78 = sphi 0, %s64
      %s82 = sphi 0, %s82
      %s84 = sphi 0, %s82
      %s85 = sphi 0, %s84
      %s99 = sphi 0, %s85
      %s107 = sphi 0, %s109
      %s110 = sphi 0, %s107
      %s111 = sphi 0, %s110
      %s127 = sphi 0, %s111
    $region4: #{tpu_custom_call.1} parent=1 // loop_header_branch
      %18 = sbr.rel (%p16) target = $region8
    $region5: #{tpu_custom_call.1} parent=1 // loop_body
      %s20 = ssub.s32 %s15, 1
      %s21 = ssub.s32 %s15, 2
      %s28 = sadd.s32 1, %s23
      %p29 = scmp.ge.s32.totalorder %s28, 2
      %s30 = scalar_select %p29, 0, %s28
      %s31 = sadd.s32 1, %s22
      %s32 = scalar_select %p29, %s31, %s22
      %p33 = scmp.ge.s32.totalorder %s32, 2
      %s34 = scalar_select %p33, 0, %s32
      %s35 = ssub.s32 %s22, %s34
      %p36 = scmp.eq.s32.totalorder %s35, 0
      %s38 = sadd.s32 %s37, 1
      %s39 = scalar_select %p36, %s37, %s38
      %p42 = pneg %p36
      %p43 = scmp.eq.s32.totalorder %s15, 3
      %p44 = por %p42, %p43
      %p45 = scmp.ne.s32.totalorder %s37, %s40
      %p46 = scmp.eq.s32.totalorder %s15, 0
      %p47 = por %p45, %p46
      %p48 = scmp.ne.s32.totalorder %s37, %s40
      %p49 = scmp.eq.s32.totalorder %s20, 3
      %p50 = por %p48, %p49
      %p51 = scmp.ne.s32.totalorder %s40, %s41
      %p52 = scmp.eq.s32.totalorder %s20, 0
      %p53 = por %p51, %p52
      %p54 = scmp.ne.s32.totalorder %s40, %s41
      %p55 = scmp.eq.s32.totalorder %s21, 3
      %p56 = por %p54, %p55
      %p58 = scmp.ne.s32.totalorder %s41, %s57
      %p59 = scmp.eq.s32.totalorder %s21, 0
      %p60 = por %p58, %p59
      %s62 = sadd.s32 %s61, 1
      %p65 = scmp.eq.s32.totalorder %s15, 3
      %p66 = scmp.ne.s32.totalorder %s61, %s63
      %p67 = scmp.eq.s32.totalorder %s15, 0
      %p68 = por %p66, %p67
      %p69 = scmp.ne.s32.totalorder %s61, %s63
      %p70 = scmp.eq.s32.totalorder %s20, 3
      %p71 = por %p69, %p70
      %p72 = scmp.ne.s32.totalorder %s63, %s64
      %p73 = scmp.eq.s32.totalorder %s20, 0
      %p74 = por %p72, %p73
      %p75 = scmp.ne.s32.totalorder %s63, %s64
      %p76 = scmp.eq.s32.totalorder %s21, 3
      %p77 = por %p75, %p76
      %p79 = scmp.ne.s32.totalorder %s64, %s78
      %p80 = scmp.eq.s32.totalorder %s21, 0
      %p81 = por %p79, %p80
      %s83 = sadd.s32 %s82, 1
      %p86 = scmp.eq.s32.totalorder %s15, 3
      %p87 = scmp.ne.s32.totalorder %s82, %s84
      %p88 = scmp.eq.s32.totalorder %s15, 0
      %p89 = por %p87, %p88
      %p90 = scmp.ne.s32.totalorder %s82, %s84
      %p91 = scmp.eq.s32.totalorder %s20, 3
      %p92 = por %p90, %p91
      %p93 = scmp.ne.s32.totalorder %s84, %s85
      %p94 = scmp.eq.s32.totalorder %s20, 0
      %p95 = por %p93, %p94
      %p96 = scmp.ne.s32.totalorder %s84, %s85
      %p97 = scmp.eq.s32.totalorder %s21, 3
      %p98 = por %p96, %p97
      %p100 = scmp.ne.s32.totalorder %s85, %s99
      %p101 = scmp.eq.s32.totalorder %s21, 0
      %p102 = por %p100, %p101
      %s103 = ssub.s32 %s22, %s34
      %s104 = ssub.s32 %s23, %s30
      %s105 = sor.u32 %s103, %s104
      %p106 = scmp.eq.s32.totalorder %s105, 0
      %s108 = sadd.s32 %s107, 1
      %s109 = scalar_select %p106, %s107, %s108
      %p112 = pneg %p106
      %p113 = scmp.eq.s32.totalorder %s15, 3
      %p114 = por %p112, %p113
      %p115 = scmp.ne.s32.totalorder %s107, %s110
      %p116 = scmp.eq.s32.totalorder %s15, 0
      %p117 = por %p115, %p116
      %p118 = scmp.ne.s32.totalorder %s107, %s110
      %p119 = scmp.eq.s32.totalorder %s20, 3
      %p120 = por %p118, %p119
      %p121 = scmp.ne.s32.totalorder %s110, %s111
      %p122 = scmp.eq.s32.totalorder %s20, 0
      %p123 = por %p121, %p122
      %p124 = scmp.ne.s32.totalorder %s110, %s111
      %p125 = scmp.eq.s32.totalorder %s21, 3
      %p126 = por %p124, %p125
      %p128 = scmp.ne.s32.totalorder %s111, %s127
      %p129 = scmp.eq.s32.totalorder %s21, 0
      %p130 = por %p128, %p129
      %p131 = scmp.le.s32.totalorder 1, %s15
      %p132 = scmp.lt.s32.totalorder %s15, 5
      %p133 = pnand %p131, %p132
      %p134 = pneg %p133
      // Predicated region
      $region9: #{tpu_custom_call.1} parent=5 // pred_check
        _
      $region10: #{tpu_custom_call.1} parent=5 // pred_check_branch
        %136 = sbr.rel (%p133) target = $region12
      $region11: #{tpu_custom_call.1} parent=5 // pred_region
        %s137 = ssub.s32 %s15, 1
        // Predicated region
        $region13: #{tpu_custom_call.1} parent=11 // pred_check
          %p138 = pneg %p74
        $region14: #{tpu_custom_call.1} parent=11 // pred_check_branch
          %140 = sbr.rel (%p138) target = $region16
        $region15: #{tpu_custom_call.1} parent=11 // pred_region
          _
        $region16: #{tpu_custom_call.1} parent=11 // pred_fallthru
          _
        // Predicated region
        $region17: #{tpu_custom_call.1} parent=11 // pred_check
          %p141 = pneg %p95
        $region18: #{tpu_custom_call.1} parent=11 // pred_check_branch
          %143 = sbr.rel (%p141) target = $region20
        $region19: #{tpu_custom_call.1} parent=11 // pred_region
          _
        $region20: #{tpu_custom_call.1} parent=11 // pred_fallthru
          _
      $region12: #{tpu_custom_call.1} parent=5 // pred_fallthru
        _
      %p144 = scmp.lt.s32.totalorder %s15, 4
      // Predicated region
      $region21: #{tpu_custom_call.1} parent=5 // pred_check
        %p145 = pneg %p144
      $region22: #{tpu_custom_call.1} parent=5 // pred_check_branch
        %147 = sbr.rel (%p145) target = $region24
      $region23: #{tpu_custom_call.1} parent=5 // pred_region
        // Predicated region
        $region25: #{tpu_custom_call.1} parent=23 // pred_check
          %p148 = pneg %p47
        $region26: #{tpu_custom_call.1} parent=23 // pred_check_branch
          %150 = sbr.rel (%p148) target = $region28
        $region27: #{tpu_custom_call.1} parent=23 // pred_region
          %s151 = sand.u32 %s37, 1
          %s152 = scalar_lea.sflag [#allocation4], %s151
          %s153 = sand.u32 %s37, 1
          %s154 = smul.addr %s153, 24
          %s155 = scalar_lea.vmem [#allocation3], %s154
          %s157 = ssub.s32 384, 384
          %158 = vsyncadd %s152, %s157
          %s159 = smul.addr %s22, 6
          %s160 = smul.addr %s159, 64
          %s161 = scalar_lea.hbm %s0, %s160
          %s162 = sshll.u32 %s155, 4
          %s163 = int_to_ptr.vmem [resolvable:$true] %s162
          %168 = dma.hbm_to_vmem [thread:$0]  %s161, 384, %s163, %s152, 192, 192, 12
        $region28: #{tpu_custom_call.1} parent=23 // pred_fallthru
          _
      $region24: #{tpu_custom_call.1} parent=5 // pred_fallthru
        _
      %p169 = scmp.le.s32.totalorder 1, %s15
      %p170 = scmp.lt.s32.totalorder %s15, 5
      %p171 = pnand %p169, %p170
      %p172 = pneg %p171
      // Predicated region
      $region29: #{tpu_custom_call.1} parent=5 // pred_check
        _
      $region30: #{tpu_custom_call.1} parent=5 // pred_check_branch
        %174 = sbr.rel (%p171) target = $region32
      $region31: #{tpu_custom_call.1} parent=5 // pred_region
        %s175 = ssub.s32 %s15, 1
        %s176 = sand.u32 %s40, 1
        %s177 = scalar_lea.sflag [#allocation4], %s176
        %s178 = sand.u32 %s40, 1
        %s179 = smul.addr %s178, 24
        %s180 = scalar_lea.vmem [#allocation3], %s179
        // Predicated region
        $region33: #{tpu_custom_call.1} parent=31 // pred_check
          %p181 = pneg %p53
        $region34: #{tpu_custom_call.1} parent=31 // pred_check_branch
          %183 = sbr.rel (%p181) target = $region36
        $region35: #{tpu_custom_call.1} parent=31 // pred_region
          %184 = dma.done %s177, 384
        $region36: #{tpu_custom_call.1} parent=31 // pred_fallthru
          _
        %s185 = sand.u32 %s40, 1
        %s186 = scalar_lea.sflag [#allocation4], %s185
        %s187 = sand.u32 %s40, 1
        %s188 = smul.addr %s187, 24
        %s189 = scalar_lea.vmem [#allocation3], %s188
        %p190 = pneg %p53
        %p191 = pneg %p50
        %p192 = pneg %p74
        %p193 = pneg %p71
        %p194 = pneg %p95
        %p195 = pneg %p92
        %p196 = pneg %p123
        %p197 = pneg %p120
        %s198 = sand.u32 %s110, 1
        %s199 = scalar_lea.sflag [#allocation5], %s198
        %s200 = sand.u32 %s110, 1
        %s201 = smul.addr %s200, 32
        %s202 = scalar_lea.vmem [#allocation6], %s201
        %p204 = scmp.eq.s32.totalorder %s25, 0
        // Predicated region
        $region37: #{tpu_custom_call.1} parent=31 // pred_check
          %p205 = pneg %p204
        $region38: #{tpu_custom_call.1} parent=31 // pred_check_branch
          %207 = sbr.rel (%p205) target = $region40
        $region39: #{tpu_custom_call.1} parent=31 // pred_region
          %v208 = vld [vmem:[%s180] sm:$0xff]
          %v209 = vld [vmem:[%s180 + $0xc] sm:$0xff]
          %210 = vst [vmem:[#allocation2] sm:$0xff] %v208
          %211 = vst [vmem:[#allocation2 + $0x8] sm:$0xff] %v209
          %v212 = vld [vmem:[%s180] sm:$0xff]
          %v213 = vld [vmem:[%s180 + $0x8] sm:$0xf]
          %v214 = vld [vmem:[%s180 + $0xc] sm:$0xff]
          %v215 = vld [vmem:[%s180 + $0x14] sm:$0xf]
          %220 = vrot.lane.b32.xlu0 %v212, 127
          %v221 = vpop.permute.xlu0 %220
          %222 = vrot.lane.b32.xlu0 %v213, 127
          %v223 = vpop.permute.xlu0 %222
          %224 = vrot.lane.b32.xlu0 %v214, 127
          %v225 = vpop.permute.xlu0 %224
          %226 = vrot.lane.b32.xlu0 %v215, 127
          %v227 = vpop.permute.xlu0 %226
          %v228 = vrot.slane %v221, 4
          %v229 = vrot.slane %v223, 4
          %v230 = vrot.slane %v225, 4
          %v231 = vrot.slane %v227, 4
          %vm232 = vcmask 1043456
          %v233 = vsel %vm232, %v228, %v229
          %vm234 = vcmask 1039360
          %v235 = vsel %vm234, %v221, %v233
          %v236 = vsel %vm232, %v230, %v231
          %v237 = vsel %vm234, %v225, %v236
          %240 = vst [vmem:[#allocation2 + $0x10] sm:$0xff] %v235
          %241 = vst [vmem:[#allocation2 + $0x18] sm:$0xff] %v237
          %v242 = vld [vmem:[%s180] sm:$0xff]
          %v243 = vld [vmem:[%s180 + $0x8] sm:$0xf]
          %v244 = vld [vmem:[%s180 + $0xc] sm:$0xff]
          %v245 = vld [vmem:[%s180 + $0x14] sm:$0xf]
          %250 = vrot.lane.b32.xlu0 %v242, 126
          %v251 = vpop.permute.xlu0 %250
          %252 = vrot.lane.b32.xlu0 %v243, 126
          %v253 = vpop.permute.xlu0 %252
          %254 = vrot.lane.b32.xlu0 %v244, 126
          %v255 = vpop.permute.xlu0 %254
          %256 = vrot.lane.b32.xlu0 %v245, 126
          %v257 = vpop.permute.xlu0 %256
          %v258 = vrot.slane %v251, 4
          %v259 = vrot.slane %v253, 4
          %v260 = vrot.slane %v255, 4
          %v261 = vrot.slane %v257, 4
          %v262 = vsel %vm232, %v258, %v259
          %vm263 = vcmask 1031168
          %v264 = vsel %vm263, %v251, %v262
          %v265 = vsel %vm232, %v260, %v261
          %v266 = vsel %vm263, %v255, %v265
          %269 = vst [vmem:[#allocation2 + $0x20] sm:$0xff] %v264
          %270 = vst [vmem:[#allocation2 + $0x28] sm:$0xff] %v266
          %v271 = vld [vmem:[%s180] sm:$0xff]
          %v272 = vld [vmem:[%s180 + $0x8] sm:$0xf]
          %v273 = vld [vmem:[%s180 + $0xc] sm:$0xff]
          %v274 = vld [vmem:[%s180 + $0x14] sm:$0xf]
          %279 = vrot.lane.b32.xlu0 %v271, 125
          %v280 = vpop.permute.xlu0 %279
          %281 = vrot.lane.b32.xlu0 %v272, 125
          %v282 = vpop.permute.xlu0 %281
          %283 = vrot.lane.b32.xlu0 %v273, 125
          %v284 = vpop.permute.xlu0 %283
          %285 = vrot.lane.b32.xlu0 %v274, 125
          %v286 = vpop.permute.xlu0 %285
          %v287 = vrot.slane %v280, 4
          %v288 = vrot.slane %v282, 4
          %v289 = vrot.slane %v284, 4
          %v290 = vrot.slane %v286, 4
          %v291 = vsel %vm232, %v287, %v288
          %vm292 = vcmask 1022976
          %v293 = vsel %vm292, %v280, %v291
          %v294 = vsel %vm232, %v289, %v290
          %v295 = vsel %vm292, %v284, %v294
          %298 = vst [vmem:[#allocation2 + $0x30] sm:$0xff] %v293
          %299 = vst [vmem:[#allocation2 + $0x38] sm:$0xff] %v295
          %v300 = vld [vmem:[%s180] sm:$0xff]
          %v301 = vld [vmem:[%s180 + $0x8] sm:$0xf]
          %v302 = vld [vmem:[%s180 + $0xc] sm:$0xff]
          %v303 = vld [vmem:[%s180 + $0x14] sm:$0xf]
          %308 = vrot.lane.b32.xlu0 %v300, 124
          %v309 = vpop.permute.xlu0 %308
          %310 = vrot.lane.b32.xlu0 %v301, 124
          %v311 = vpop.permute.xlu0 %310
          %312 = vrot.lane.b32.xlu0 %v302, 124
          %v313 = vpop.permute.xlu0 %312
          %314 = vrot.lane.b32.xlu0 %v303, 124
          %v315 = vpop.permute.xlu0 %314
          %v316 = vrot.slane %v309, 4
          %v317 = vrot.slane %v311, 4
          %v318 = vrot.slane %v313, 4
          %v319 = vrot.slane %v315, 4
          %v320 = vsel %vm232, %v316, %v317
          %vm321 = vcmask 1014784
          %v322 = vsel %vm321, %v309, %v320
          %v323 = vsel %vm232, %v318, %v319
          %v324 = vsel %vm321, %v313, %v323
          %327 = vst [vmem:[#allocation2 + $0x40] sm:$0xff] %v322
          %328 = vst [vmem:[#allocation2 + $0x48] sm:$0xff] %v324
        $region40: #{tpu_custom_call.1} parent=31 // pred_fallthru
          _
        %s329 = smul.u32 %s25, 128
        %s330 = sshra.s32 %s329, 7
        %s331 = sand.u32 %s329, 127
        %s332 = smul.addr %s330, 4
        %s333 = scalar_lea.vmem [#allocation2], %s332
        %v334 = vld [vmem:[%s333] sm:$0xf]
        %v335 = vld [vmem:[%s333 + $0x8] sm:$0xf]
        %v336 = vld [vmem:[%s333 + $0x10] sm:$0xf]
        %v337 = vld [vmem:[%s333 + $0x18] sm:$0xf]
        %v338 = vld [vmem:[%s333 + $0x20] sm:$0xf]
        %v339 = vld [vmem:[%s333 + $0x28] sm:$0xf]
        %v340 = vld [vmem:[%s333 + $0x30] sm:$0xf]
        %v341 = vld [vmem:[%s333 + $0x38] sm:$0xf]
        %v342 = vld [vmem:[%s333 + $0x40] sm:$0xf]
        %v343 = vld [vmem:[%s333 + $0x48] sm:$0xf]
        %v344 = vld [vmem:[%s1] sm:$0xf]
        %v345 = vld [vmem:[%s1 + $0x4] sm:$0xf]
        %v346 = vld [vmem:[%s1 + $0x8] sm:$0xf]
        %v347 = vld [vmem:[%s1 + $0xc] sm:$0xf]
        %v348 = vld [vmem:[%s2] sm:$0xff]
        %v349 = vld [vmem:[%s2 + $0x8] sm:$0xff]
        %v350 = vld [vmem:[%s2 + $0x10] sm:$0xff]
        %v351 = vld [vmem:[%s2 + $0x18] sm:$0xff]
        %353 = vset.pattern.permute.xlu0 0
        %354 = vperm.xlu0 %353, %v348
        %v355 = vpop.permute.xlu0 %354
        %358 = vset.pattern.permute.xlu0 0
        %359 = vperm.xlu0 %358, %v349
        %v360 = vpop.permute.xlu0 %359
        %363 = vset.pattern.permute.xlu0 0
        %364 = vperm.xlu0 %363, %v350
        %v365 = vpop.permute.xlu0 %364
        %368 = vset.pattern.permute.xlu0 0
        %369 = vperm.xlu0 %368, %v351
        %v370 = vpop.permute.xlu0 %369
        %v376 = vunpack.c.l.b16 %v344
        %v377 = vunpack.c.l.b16 %v345
        %v378 = vunpack.c.l.b16 %v346
        %v379 = vunpack.c.l.b16 %v347
        %v380 = vpack.c.b16 %v377, %v376
        %v381 = vpack.c.b16 %v379, %v378
        %v392 = vunpack.c.l.b16 %v334
        %v393 = vunpack.c.l.b16 %v335
        %v394 = vunpack.c.l.b16 %v336
        %v395 = vunpack.c.l.b16 %v337
        %v396 = vunpack.c.l.b16 %v338
        %v397 = vunpack.c.l.b16 %v339
        %v398 = vunpack.c.l.b16 %v340
        %v399 = vunpack.c.l.b16 %v341
        %v400 = vunpack.c.l.b16 %v342
        %v401 = vunpack.c.l.b16 %v343
        %v402 = vpack.c.b16 %v393, %v392
        %v403 = vpack.c.b16 %v395, %v394
        %v404 = vpack.c.b16 %v397, %v396
        %v405 = vpack.c.b16 %v399, %v398
        %v406 = vpack.c.b16 %v401, %v400
        %vm412 = vcmask 654336
        %v414 = vsel %vm412, %v380, 0
        %v417 = vsel %vm412, %v381, 0
        %419 = vmatprep.subr.bf16.mxu0 0
        %420 = vmatpush1.bf16.msra.mxu0 0
        %421 = vmatprep.subr.bf16.mxu0 0
        %422 = vmatpush1.bf16.msra.mxu0 0
        %423 = vmatprep.subr.bf16.mxu0 0
        %424 = vmatpush1.bf16.msra.mxu0 0
        %425 = vmatprep.subr.bf16.mxu0 0
        %426 = vmatpush1.bf16.msra.mxu0 %v406
        %427 = vmatprep.subr.bf16.mxu0 0
        %428 = vmatpush1.bf16.msra.mxu0 %v405
        %429 = vmatprep.subr.bf16.mxu0 0
        %430 = vmatpush1.bf16.msra.mxu0 %v404
        %431 = vmatprep.subr.bf16.mxu0 0
        %432 = vmatpush1.bf16.msra.mxu0 %v403
        %433 = vmatprep.subr.bf16.mxu0 0
        %434 = vmatpush1.bf16.msra.mxu0 %v402
        %435 = vmatprep.subr.bf16.mxu0 0
        %436 = vmatpush2.bf16.msra.mxu0 0
        %437 = vmatprep.subr.bf16.mxu0 0
        %438 = vmatpush2.bf16.msra.mxu0 0
        %439 = vmatprep.subr.bf16.mxu0 0
        %440 = vmatpush2.bf16.msra.mxu0 0
        %441 = vmatprep.subr.bf16.mxu0 0
        %442 = vmatpush2.bf16.msra.mxu0 0
        %443 = vmatprep.subr.bf16.mxu0 0
        %444 = vmatpush2.bf16.msra.mxu0 0
        %445 = vmatprep.subr.bf16.mxu0 0
        %446 = vmatpush2.bf16.msra.mxu0 0
        %447 = vmatprep.subr.bf16.mxu0 0
        %448 = vmatpush2.bf16.msra.mxu0 0
        %449 = vmatprep.subr.bf16.mxu0 0
        %450 = vmatpush2.bf16.msra.mxu0 0
        %451 = vmatprep.mubr.bf16.mxu0 0
        %452 = vmatmul.mubr.bf16.gmra.mxu0 %v414
        %v453 = vpop.f32.mrf.mxu0
        %v454 = vadd.f32 %v355, %v453
        %v455 = vpop.f32.mrf.mxu0
        %v456 = vpop.f32.mrf.mxu0
        %v457 = vadd.f32 %v360, %v456
        %v458 = vpop.f32.mrf.mxu0
        %459 = vmatprep.mubr.bf16.mxu0 0
        %460 = vmatmul.mubr.bf16.gmra.mxu0 %v417
        %v461 = vpop.f32.mrf.mxu0
        %v462 = vadd.f32 %v365, %v461
        %v463 = vpop.f32.mrf.mxu0
        %v464 = vpop.f32.mrf.mxu0
        %v465 = vadd.f32 %v370, %v464
        %v466 = vpop.f32.mrf.mxu0
        %467 = vdwg.mxu0
        %468 = vst [vmem:[%s202] sm:$0xff] %v454
        %469 = vst [vmem:[%s202 + $0x8] sm:$0xff] %v457
        %470 = vst [vmem:[%s202 + $0x10] sm:$0xff] %v462
        %471 = vst [vmem:[%s202 + $0x18] sm:$0xff] %v465
        %s472 = sand.u32 %s110, 1
        %s473 = scalar_lea.sflag [#allocation5], %s472
        %s474 = sand.u32 %s110, 1
        %s475 = smul.addr %s474, 32
        %s476 = scalar_lea.vmem [#allocation6], %s475
        // Predicated region
        $region41: #{tpu_custom_call.1} parent=31 // pred_check
          %p477 = pneg %p120
        $region42: #{tpu_custom_call.1} parent=31 // pred_check_branch
          %479 = sbr.rel (%p477) target = $region44
        $region43: #{tpu_custom_call.1} parent=31 // pred_region
          %s481 = ssub.s32 512, 512
          %482 = vsyncadd %s473, %s481
          %s483 = smul.addr %s24, 8
          %s484 = sadd.s32 %s25, %s483
          %s485 = smul.addr %s484, 128
          %s486 = scalar_lea.hbm %s3, %s485
          %s487 = sshll.u32 %s476, 4
          %s488 = int_to_ptr.vmem [resolvable:$true] %s487
          %493 = dma.vmem_to_hbm [thread:$0]  %s488, 512, %s486, %s473, 128, 256, 8
        $region44: #{tpu_custom_call.1} parent=31 // pred_fallthru
          _
      $region32: #{tpu_custom_call.1} parent=5 // pred_fallthru
        _
      %p494 = scmp.le.s32.totalorder 2, %s15
      // Predicated region
      $region45: #{tpu_custom_call.1} parent=5 // pred_check
        %p495 = pneg %p494
      $region46: #{tpu_custom_call.1} parent=5 // pred_check_branch
        %497 = sbr.rel (%p495) target = $region48
      $region47: #{tpu_custom_call.1} parent=5 // pred_region
        %s498 = ssub.s32 %s15, 2
        // Predicated region
        $region49: #{tpu_custom_call.1} parent=47 // pred_check
          %p499 = pneg %p126
        $region50: #{tpu_custom_call.1} parent=47 // pred_check_branch
          %501 = sbr.rel (%p499) target = $region52
        $region51: #{tpu_custom_call.1} parent=47 // pred_region
          %s502 = sand.u32 %s111, 1
          %s503 = scalar_lea.sflag [#allocation5], %s502
          %s504 = sand.u32 %s111, 1
          %s505 = smul.addr %s504, 32
          %s506 = scalar_lea.vmem [#allocation6], %s505
          %507 = dma.done %s503, 512
        $region52: #{tpu_custom_call.1} parent=47 // pred_fallthru
          _
      $region48: #{tpu_custom_call.1} parent=5 // pred_fallthru
        _
    $region6: #{tpu_custom_call.1} parent=1 // loop_footer
      %s19 = sadd.s32 1, %s15
    $region7: #{tpu_custom_call.1} parent=1 // loop_footer_branch
      %14 = sbr.rel target = $region3
    $region8: #{tpu_custom_call.1} parent=1 // loop_exit
      _
    %508 = vsyncpa [#allocation4], 1
    %s509 = scalar_lea.sflag [#allocation4], 1
    %510 = vsyncpa %s509, 1
    %511 = vsyncpa [#allocation5], 1
    %s512 = scalar_lea.sflag [#allocation5], 1
    %513 = vsyncpa %s512, 1

</llo_original>
